<compile_context>
chip_gen: v5e
topology: v5e:2x2
jax: 0.10.0
libtpu: 0.0.40
codegen_flags: <defaults>
</compile_context>

<pallas_src>
import math

import jax
import jax.numpy as jnp
from jax.experimental import pallas as pl
from jax.experimental.pallas import tpu as pltpu


def _round_up(a, b):
    return (a + b - 1) // b * b


def _pallas_forward(x2d, w1p, b1p, w2p, b2p, *, h_true, bm, matmul_dtype,
                    single_buffer_consts):
    """x2d: (Np, Hp) f32. Weights pre-transposed/folded/padded; biases (1, Hp) f32."""
    Np, Hp = x2d.shape
    pad_cols = float(Hp - h_true)
    inv_h = 1.0 / float(h_true)
    inv_sqrt2 = 1.0 / math.sqrt(2.0)

    def kernel(x_ref, w1_ref, b1_ref, w2_ref, b2_ref, o_ref):
        x = x_ref[...].astype(jnp.float32)                        # (bm, Hp)

        # LayerNorm over the *true* hidden dim. Padded columns of x are zero, so
        # they add 0 to the sum; the variance gets an exact scalar correction for
        # the (Hp - H) padded columns, where (x - mean) == -mean.
        mean = jnp.sum(x, axis=-1, keepdims=True) * inv_h
        d = x - mean
        var = (jnp.sum(d * d, axis=-1, keepdims=True)
               - pad_cols * mean * mean) * inv_h
        xn = d * jax.lax.rsqrt(var + 1e-5)
        # gamma / beta are folded into w1 / b1 by the wrapper.

        # fc1 + exact GELU (erf form == nn.GELU() default semantics).
        h = jnp.dot(xn.astype(matmul_dtype), w1_ref[...],
                    preferred_element_type=jnp.float32) + b1_ref[...]
        h = 0.5 * h * (1.0 + jax.lax.erf(h * inv_sqrt2))

        # fc2
        y = jnp.dot(h.astype(matmul_dtype), w2_ref[...],
                    preferred_element_type=jnp.float32) + b2_ref[...]

        # dropout (identity in eval) + residual
        o_ref[...] = (y + x).astype(o_ref.dtype)

    const_map = lambda i: (0, 0)
    if single_buffer_consts:
        def const_spec(shape):
            # Block index never changes -> no need for double buffering.
            return pl.BlockSpec(shape, const_map, pipeline_mode=pl.Buffered(1))
    else:
        def const_spec(shape):
            return pl.BlockSpec(shape, const_map)

    # Explicit VMEM budget: resident weights/biases + double-buffered x/out tiles
    # + headroom for f32 intermediates. Clamp to [32 MiB, 64 MiB] (v7x physical).
    w_bufs = 1 if single_buffer_consts else 2
    w_item = jnp.dtype(matmul_dtype).itemsize
    est = (2 * Hp * Hp * w_item * w_bufs          # W1, W2
           + 2 * Hp * 4 * w_bufs                  # b1, b2
           + 2 * 2 * bm * Hp * 4                  # x / out, double buffered
           + 3 * bm * Hp * 4)                     # intermediate headroom
    vmem_limit = int(min(64 * 1024 * 1024,
                         max(32 * 1024 * 1024, est + (8 << 20))))

    grid = (Np // bm,)
    return pl.pallas_call(
        kernel,
        out_shape=jax.ShapeDtypeStruct((Np, Hp), x2d.dtype),
        grid_spec=pltpu.PrefetchScalarGridSpec(
            num_scalar_prefetch=0,
            grid=grid,
            in_specs=[
                pl.BlockSpec((bm, Hp), lambda i: (i, 0)),  # x row tile (pipelined)
                const_spec((Hp, Hp)),                      # W1^T (gamma folded in)
                const_spec((1, Hp)),                       # b1 (beta folded in)
                const_spec((Hp, Hp)),                      # W2^T
                const_spec((1, Hp)),                       # b2
            ],
            out_specs=pl.BlockSpec((bm, Hp), lambda i: (i, 0)),
        ),
        compiler_params=pltpu.CompilerParams(
            # "parallel" row axis shards grid steps across v7x's 2 TensorCores.
            dimension_semantics=("parallel",),
            vmem_limit_bytes=vmem_limit),
    )(x2d, w1p, b1p, w2p, b2p)


def fc_res_block(x, gamma, beta, w1, b1, w2, b2, *, block_rows=256,
                 matmul_dtype=jnp.bfloat16):
    """x: (B, T, H) float32. w1, w2 in PyTorch layout (out_features, in_features)."""
    B, T, H = x.shape
    N = B * T

    # Lane-dense hidden dim: pad H up to a multiple of 128.
    Hp = _round_up(max(H, 128), 128)
    # Row tile: large by default; shrink for tiny inputs. Whenever N > block_rows
    # the grid has >= 2 steps, so both v7x TensorCores get work.
    bm = min(block_rows, _round_up(N, 8))
    Np = _round_up(N, bm)

    x2d = x.reshape(N, H).astype(jnp.float32)
    if (Np, Hp) != (N, H):
        x2d = jnp.pad(x2d, ((0, Np - N), (0, Hp - H)))

    # PyTorch Linear computes x @ W.T + b -> pre-transpose to (in, out).
    w1t = jnp.asarray(w1, jnp.float32).T
    w2t = jnp.asarray(w2, jnp.float32).T
    # Fold the LayerNorm affine into fc1:
    #   (xn*gamma + beta) @ W1t + b1 == xn @ (gamma[:, None] * W1t) + (b1 + beta @ W1t)
    b1f = jnp.asarray(b1, jnp.float32) + jnp.asarray(beta, jnp.float32) @ w1t
    w1tf = jnp.asarray(gamma, jnp.float32)[:, None] * w1t
    b2f = jnp.asarray(b2, jnp.float32)

    if Hp != H:
        pad2 = ((0, Hp - H), (0, Hp - H))
        w1tf = jnp.pad(w1tf, pad2)
        w2t = jnp.pad(w2t, pad2)
        b1f = jnp.pad(b1f, (0, Hp - H))
        b2f = jnp.pad(b2f, (0, Hp - H))

    w1p = w1tf.astype(matmul_dtype)
    w2p = w2t.astype(matmul_dtype)
    b1p = b1f.reshape(1, Hp)
    b2p = b2f.reshape(1, Hp)

    try:
        out2d = _pallas_forward(x2d, w1p, b1p, w2p, b2p, h_true=H, bm=bm,
                                matmul_dtype=matmul_dtype,
                                single_buffer_consts=True)
    except Exception:
        # pipeline_mode=pl.Buffered(1) not supported on this JAX build; fall back
        # to default double buffering of the constant operands.
        out2d = _pallas_forward(x2d, w1p, b1p, w2p, b2p, h_true=H, bm=bm,
                                matmul_dtype=matmul_dtype,
                                single_buffer_consts=False)

    return out2d[:N, :H].reshape(B, T, H)


def _reference(x, gamma, beta, w1, b1, w2, b2):
    mean = jnp.mean(x, axis=-1, keepdims=True)
    var = jnp.mean(jnp.square(x - mean), axis=-1, keepdims=True)
    xn = (x - mean) / jnp.sqrt(var + 1e-5) * gamma + beta
    h = xn @ w1.T + b1
    h = 0.5 * h * (1.0 + jax.lax.erf(h / math.sqrt(2.0)))
    y = h @ w2.T + b2
    return y + x


if __name__ == "__main__":
    hidden_dim = 32
    B, T = 2, 8

    key = jax.random.PRNGKey(0)
    kx, k1, k2, k3, k4, k5, k6 = jax.random.split(key, 7)

    x = jax.random.normal(kx, (B, T, hidden_dim), dtype=jnp.float32)

    bound = 1.0 / math.sqrt(hidden_dim)
    gamma = 1.0 + 0.1 * jax.random.normal(k5, (hidden_dim,), jnp.float32)
    beta = 0.1 * jax.random.normal(k6, (hidden_dim,), jnp.float32)
    w1 = jax.random.uniform(k1, (hidden_dim, hidden_dim), jnp.float32, -bound, bound)
    b1 = jax.random.uniform(k2, (hidden_dim,), jnp.float32, -bound, bound)
    w2 = jax.random.uniform(k3, (hidden_dim, hidden_dim), jnp.float32, -bound, bound)
    b2 = jax.random.uniform(k4, (hidden_dim,), jnp.float32, -bound, bound)

    ref = _reference(x, gamma, beta, w1, b1, w2, b2)

    # f32-matmul path: tight numerical check of the fused kernel.
    out_f32 = fc_res_block(x, gamma, beta, w1, b1, w2, b2,
                           matmul_dtype=jnp.float32)
    out_f32 = jax.block_until_ready(out_f32)
    assert out_f32.shape == (B, T, hidden_dim)
    assert jnp.allclose(out_f32, ref, atol=1e-4, rtol=1e-4)

    # Default fast path: bf16 matmul operands with f32 accumulation.
    out_bf16 = fc_res_block(x, gamma, beta, w1, b1, w2, b2)
    out_bf16 = jax.block_until_ready(out_bf16)
    assert out_bf16.shape == (B, T, hidden_dim)
    assert jnp.allclose(out_bf16, ref, atol=5e-2, rtol=5e-2)

    print("KERNEL_OK")
</pallas_src>

<mosaic_0001>
module attributes {stable_mosaic.version = 11 : i64} {
  func.func @kernel(%arg0: i32, %arg1: memref<16x128xf32, #tpu.memory_space<vmem>>, %arg2: memref<128x128xf32, #tpu.memory_space<vmem>>, %arg3: memref<1x128xf32, #tpu.memory_space<vmem>>, %arg4: memref<128x128xf32, #tpu.memory_space<vmem>>, %arg5: memref<1x128xf32, #tpu.memory_space<vmem>>, %arg6: memref<16x128xf32, #tpu.memory_space<vmem>>) attributes {dimension_semantics = [#tpu.dimension_semantics<parallel>], iteration_bounds = array<i64: 1>, scalar_prefetch = 0 : i64, scratch_operands = 0 : i64, tpu.core_type = #tpu.core_type<tc>, window_params = [{transform_indices = @transform_0, window_bounds = array<i64: 16, 128>}, {pipeline_mode = #tpu.pipeline_mode<synchronous>, transform_indices = @transform_1, window_bounds = array<i64: 128, 128>}, {pipeline_mode = #tpu.pipeline_mode<synchronous>, transform_indices = @transform_2, window_bounds = array<i64: 1, 128>}, {pipeline_mode = #tpu.pipeline_mode<synchronous>, transform_indices = @transform_3, window_bounds = array<i64: 128, 128>}, {pipeline_mode = #tpu.pipeline_mode<synchronous>, transform_indices = @transform_4, window_bounds = array<i64: 1, 128>}, {transform_indices = @transform_5, window_bounds = array<i64: 16, 128>}]} {
    %c0 = arith.constant 0 : index
    %c0_0 = arith.constant 0 : index
    %0 = vector.load %arg1[%c0, %c0_0] : memref<16x128xf32, #tpu.memory_space<vmem>>, vector<16x128xf32>
    %cst = arith.constant dense<0.000000e+00> : vector<16xf32>
    %1 = vector.multi_reduction <add>, %0, %cst [1] : vector<16x128xf32> to vector<16xf32>
    %2 = vector.shape_cast %1 : vector<16xf32> to vector<16x1xf32>
    %cst_1 = arith.constant 3.125000e-02 : f32
    %3 = vector.broadcast %cst_1 : f32 to vector<16x1xf32>
    %4 = arith.mulf %2, %3 : vector<16x1xf32>
    %5 = vector.broadcast %4 : vector<16x1xf32> to vector<16x128xf32>
    %6 = arith.subf %0, %5 : vector<16x128xf32>
    %7 = arith.mulf %6, %6 : vector<16x128xf32>
    %cst_2 = arith.constant dense<0.000000e+00> : vector<16xf32>
    %8 = vector.multi_reduction <add>, %7, %cst_2 [1] : vector<16x128xf32> to vector<16xf32>
    %9 = vector.shape_cast %8 : vector<16xf32> to vector<16x1xf32>
    %cst_3 = arith.constant 9.600000e+01 : f32
    %10 = vector.broadcast %cst_3 : f32 to vector<16x1xf32>
    %11 = arith.mulf %10, %4 : vector<16x1xf32>
    %12 = arith.mulf %11, %4 : vector<16x1xf32>
    %13 = arith.subf %9, %12 : vector<16x1xf32>
    %cst_4 = arith.constant 3.125000e-02 : f32
    %14 = vector.broadcast %cst_4 : f32 to vector<16x1xf32>
    %15 = arith.mulf %13, %14 : vector<16x1xf32>
    %cst_5 = arith.constant 9.99999974E-6 : f32
    %16 = vector.broadcast %cst_5 : f32 to vector<16x1xf32>
    %17 = arith.addf %15, %16 : vector<16x1xf32>
    %18 = math.rsqrt %17 : vector<16x1xf32>
    %19 = vector.broadcast %18 : vector<16x1xf32> to vector<16x128xf32>
    %20 = arith.mulf %6, %19 : vector<16x128xf32>
    %c0_6 = arith.constant 0 : index
    %c0_7 = arith.constant 0 : index
    %21 = vector.load %arg2[%c0_6, %c0_7] : memref<128x128xf32, #tpu.memory_space<vmem>>, vector<128x128xf32>
    %cst_8 = arith.constant dense<0.000000e+00> : vector<16x128xf32>
    %22 = tpu.matmul %20, %21, %cst_8 {dimension_numbers = #tpu.dot_dimension_numbers<[1], [0], [0], [1], [0, 0, 1, 1], [], []>} : vector<16x128xf32>, vector<128x128xf32>, vector<16x128xf32> -> vector<16x128xf32>
    %c0_9 = arith.constant 0 : index
    %c0_10 = arith.constant 0 : index
    %23 = vector.load %arg3[%c0_9, %c0_10] : memref<1x128xf32, #tpu.memory_space<vmem>>, vector<1x128xf32>
    %24 = vector.broadcast %23 : vector<1x128xf32> to vector<16x128xf32>
    %25 = arith.addf %22, %24 : vector<16x128xf32>
    %cst_11 = arith.constant 5.000000e-01 : f32
    %26 = vector.broadcast %cst_11 : f32 to vector<16x128xf32>
    %27 = arith.mulf %26, %25 : vector<16x128xf32>
    %cst_12 = arith.constant 0.707106769 : f32
    %28 = vector.broadcast %cst_12 : f32 to vector<16x128xf32>
    %29 = arith.mulf %25, %28 : vector<16x128xf32>
    %30 = math.erf %29 : vector<16x128xf32>
    %cst_13 = arith.constant 1.000000e+00 : f32
    %31 = vector.broadcast %cst_13 : f32 to vector<16x128xf32>
    %32 = arith.addf %31, %30 : vector<16x128xf32>
    %33 = arith.mulf %27, %32 : vector<16x128xf32>
    %c0_14 = arith.constant 0 : index
    %c0_15 = arith.constant 0 : index
    %34 = vector.load %arg4[%c0_14, %c0_15] : memref<128x128xf32, #tpu.memory_space<vmem>>, vector<128x128xf32>
    %cst_16 = arith.constant dense<0.000000e+00> : vector<16x128xf32>
    %35 = tpu.matmul %33, %34, %cst_16 {dimension_numbers = #tpu.dot_dimension_numbers<[1], [0], [0], [1], [0, 0, 1, 1], [], []>} : vector<16x128xf32>, vector<128x128xf32>, vector<16x128xf32> -> vector<16x128xf32>
    %c0_17 = arith.constant 0 : index
    %c0_18 = arith.constant 0 : index
    %36 = vector.load %arg5[%c0_17, %c0_18] : memref<1x128xf32, #tpu.memory_space<vmem>>, vector<1x128xf32>
    %37 = vector.broadcast %36 : vector<1x128xf32> to vector<16x128xf32>
    %38 = arith.addf %35, %37 : vector<16x128xf32>
    %39 = arith.addf %38, %0 : vector<16x128xf32>
    %c0_19 = arith.constant 0 : index
    %c0_20 = arith.constant 0 : index
    %40 = vector.load %arg6[%c0_19, %c0_20] : memref<16x128xf32, #tpu.memory_space<vmem>>, vector<16x128xf32>
    tpu.vector_store %arg6[%c0_19, %c0_20], %39 {strides = array<i32>} : memref<16x128xf32, #tpu.memory_space<vmem>>, vector<16x128xf32>,
    return
  }
  func.func @transform_0(%arg0: i32) -> (i32, i32) {
    %c0_i32 = arith.constant 0 : i32
    %c0_i32_0 = arith.constant 0 : i32
    return %arg0, %c0_i32 : i32, i32
  }
  func.func @transform_1(%arg0: i32) -> (i32, i32) {
    %c0_i32 = arith.constant 0 : i32
    %c0_i32_0 = arith.constant 0 : i32
    %c0_i32_1 = arith.constant 0 : i32
    return %c0_i32, %c0_i32_0 : i32, i32
  }
  func.func @transform_2(%arg0: i32) -> (i32, i32) {
    %c0_i32 = arith.constant 0 : i32
    %c0_i32_0 = arith.constant 0 : i32
    %c0_i32_1 = arith.constant 0 : i32
    return %c0_i32, %c0_i32_0 : i32, i32
  }
  func.func @transform_3(%arg0: i32) -> (i32, i32) {
    %c0_i32 = arith.constant 0 : i32
    %c0_i32_0 = arith.constant 0 : i32
    %c0_i32_1 = arith.constant 0 : i32
    return %c0_i32, %c0_i32_0 : i32, i32
  }
  func.func @transform_4(%arg0: i32) -> (i32, i32) {
    %c0_i32 = arith.constant 0 : i32
    %c0_i32_0 = arith.constant 0 : i32
    %c0_i32_1 = arith.constant 0 : i32
    return %c0_i32, %c0_i32_0 : i32, i32
  }
  func.func @transform_5(%arg0: i32) -> (i32, i32) {
    %c0_i32 = arith.constant 0 : i32
    %c0_i32_0 = arith.constant 0 : i32
    return %arg0, %c0_i32 : i32, i32
  }
}

module attributes {stable_mosaic.version = 11 : i64} {
  func.func @kernel(%arg0: i32, %arg1: memref<16x128xf32, #tpu.memory_space<vmem>>, %arg2: memref<128x128xf32, #tpu.memory_space<vmem>>, %arg3: memref<1x128xf32, #tpu.memory_space<vmem>>, %arg4: memref<128x128xf32, #tpu.memory_space<vmem>>, %arg5: memref<1x128xf32, #tpu.memory_space<vmem>>, %arg6: memref<16x128xf32, #tpu.memory_space<vmem>>) attributes {dimension_semantics = [#tpu.dimension_semantics<parallel>], iteration_bounds = array<i64: 1>, scalar_prefetch = 0 : i64, scratch_operands = 0 : i64, tpu.core_type = #tpu.core_type<tc>, window_params = [{transform_indices = @transform_0, window_bounds = array<i64: 16, 128>}, {pipeline_mode = #tpu.pipeline_mode<synchronous>, transform_indices = @transform_1, window_bounds = array<i64: 128, 128>}, {pipeline_mode = #tpu.pipeline_mode<synchronous>, transform_indices = @transform_2, window_bounds = array<i64: 1, 128>}, {pipeline_mode = #tpu.pipeline_mode<synchronous>, transform_indices = @transform_3, window_bounds = array<i64: 128, 128>}, {pipeline_mode = #tpu.pipeline_mode<synchronous>, transform_indices = @transform_4, window_bounds = array<i64: 1, 128>}, {transform_indices = @transform_5, window_bounds = array<i64: 16, 128>}]} {
    %c0 = arith.constant 0 : index
    %c0_0 = arith.constant 0 : index
    %0 = vector.load %arg1[%c0, %c0_0] : memref<16x128xf32, #tpu.memory_space<vmem>>, vector<16x128xf32>
    %cst = arith.constant dense<0.000000e+00> : vector<16xf32>
    %1 = vector.multi_reduction <add>, %0, %cst [1] : vector<16x128xf32> to vector<16xf32>
    %2 = vector.shape_cast %1 : vector<16xf32> to vector<16x1xf32>
    %cst_1 = arith.constant 3.125000e-02 : f32
    %3 = vector.broadcast %cst_1 : f32 to vector<16x1xf32>
    %4 = arith.mulf %2, %3 : vector<16x1xf32>
    %5 = vector.broadcast %4 : vector<16x1xf32> to vector<16x128xf32>
    %6 = arith.subf %0, %5 : vector<16x128xf32>
    %7 = arith.mulf %6, %6 : vector<16x128xf32>
    %cst_2 = arith.constant dense<0.000000e+00> : vector<16xf32>
    %8 = vector.multi_reduction <add>, %7, %cst_2 [1] : vector<16x128xf32> to vector<16xf32>
    %9 = vector.shape_cast %8 : vector<16xf32> to vector<16x1xf32>
    %cst_3 = arith.constant 9.600000e+01 : f32
    %10 = vector.broadcast %cst_3 : f32 to vector<16x1xf32>
    %11 = arith.mulf %10, %4 : vector<16x1xf32>
    %12 = arith.mulf %11, %4 : vector<16x1xf32>
    %13 = arith.subf %9, %12 : vector<16x1xf32>
    %cst_4 = arith.constant 3.125000e-02 : f32
    %14 = vector.broadcast %cst_4 : f32 to vector<16x1xf32>
    %15 = arith.mulf %13, %14 : vector<16x1xf32>
    %cst_5 = arith.constant 9.99999974E-6 : f32
    %16 = vector.broadcast %cst_5 : f32 to vector<16x1xf32>
    %17 = arith.addf %15, %16 : vector<16x1xf32>
    %18 = math.rsqrt %17 : vector<16x1xf32>
    %19 = vector.broadcast %18 : vector<16x1xf32> to vector<16x128xf32>
    %20 = arith.mulf %6, %19 : vector<16x128xf32>
    %c0_6 = arith.constant 0 : index
    %c0_7 = arith.constant 0 : index
    %21 = vector.load %arg2[%c0_6, %c0_7] : memref<128x128xf32, #tpu.memory_space<vmem>>, vector<128x128xf32>
    %cst_8 = arith.constant dense<0.000000e+00> : vector<16x128xf32>
    %22 = tpu.matmul %20, %21, %cst_8 {dimension_numbers = #tpu.dot_dimension_numbers<[1], [0], [0], [1], [0, 0, 1, 1], [], []>} : vector<16x128xf32>, vector<128x128xf32>, vector<16x128xf32> -> vector<16x128xf32>
    %c0_9 = arith.constant 0 : index
    %c0_10 = arith.constant 0 : index
    %23 = vector.load %arg3[%c0_9, %c0_10] : memref<1x128xf32, #tpu.memory_space<vmem>>, vector<1x128xf32>
    %24 = vector.broadcast %23 : vector<1x128xf32> to vector<16x128xf32>
    %25 = arith.addf %22, %24 : vector<16x128xf32>
    %cst_11 = arith.constant 5.000000e-01 : f32
    %26 = vector.broadcast %cst_11 : f32 to vector<16x128xf32>
    %27 = arith.mulf %26, %25 : vector<16x128xf32>
    %cst_12 = arith.constant 0.707106769 : f32
    %28 = vector.broadcast %cst_12 : f32 to vector<16x128xf32>
    %29 = arith.mulf %25, %28 : vector<16x128xf32>
    %30 = math.erf %29 : vector<16x128xf32>
    %cst_13 = arith.constant 1.000000e+00 : f32
    %31 = vector.broadcast %cst_13 : f32 to vector<16x128xf32>
    %32 = arith.addf %31, %30 : vector<16x128xf32>
    %33 = arith.mulf %27, %32 : vector<16x128xf32>
    %c0_14 = arith.constant 0 : index
    %c0_15 = arith.constant 0 : index
    %34 = vector.load %arg4[%c0_14, %c0_15] : memref<128x128xf32, #tpu.memory_space<vmem>>, vector<128x128xf32>
    %cst_16 = arith.constant dense<0.000000e+00> : vector<16x128xf32>
    %35 = tpu.matmul %33, %34, %cst_16 {dimension_numbers = #tpu.dot_dimension_numbers<[1], [0], [0], [1], [0, 0, 1, 1], [], []>} : vector<16x128xf32>, vector<128x128xf32>, vector<16x128xf32> -> vector<16x128xf32>
    %c0_17 = arith.constant 0 : index
    %c0_18 = arith.constant 0 : index
    %36 = vector.load %arg5[%c0_17, %c0_18] : memref<1x128xf32, #tpu.memory_space<vmem>>, vector<1x128xf32>
    %37 = vector.broadcast %36 : vector<1x128xf32> to vector<16x128xf32>
    %38 = arith.addf %35, %37 : vector<16x128xf32>
    %39 = arith.addf %38, %0 : vector<16x128xf32>
    %c0_19 = arith.constant 0 : index
    %c0_20 = arith.constant 0 : index
    %40 = vector.load %arg6[%c0_19, %c0_20] : memref<16x128xf32, #tpu.memory_space<vmem>>, vector<16x128xf32>
    tpu.vector_store %arg6[%c0_19, %c0_20], %39 {strides = array<i32>} : memref<16x128xf32, #tpu.memory_space<vmem>>, vector<16x128xf32>,
    return
  }
  func.func @transform_0(%arg0: i32) -> (i32, i32) {
    %c0_i32 = arith.constant 0 : i32
    %c0_i32_0 = arith.constant 0 : i32
    return %arg0, %c0_i32 : i32, i32
  }
  func.func @transform_1(%arg0: i32) -> (i32, i32) {
    %c0_i32 = arith.constant 0 : i32
    %c0_i32_0 = arith.constant 0 : i32
    %c0_i32_1 = arith.constant 0 : i32
    return %c0_i32, %c0_i32_0 : i32, i32
  }
  func.func @transform_2(%arg0: i32) -> (i32, i32) {
    %c0_i32 = arith.constant 0 : i32
    %c0_i32_0 = arith.constant 0 : i32
    %c0_i32_1 = arith.constant 0 : i32
    return %c0_i32, %c0_i32_0 : i32, i32
  }
  func.func @transform_3(%arg0: i32) -> (i32, i32) {
    %c0_i32 = arith.constant 0 : i32
    %c0_i32_0 = arith.constant 0 : i32
    %c0_i32_1 = arith.constant 0 : i32
    return %c0_i32, %c0_i32_0 : i32, i32
  }
  func.func @transform_4(%arg0: i32) -> (i32, i32) {
    %c0_i32 = arith.constant 0 : i32
    %c0_i32_0 = arith.constant 0 : i32
    %c0_i32_1 = arith.constant 0 : i32
    return %c0_i32, %c0_i32_0 : i32, i32
  }
  func.func @transform_5(%arg0: i32) -> (i32, i32) {
    %c0_i32 = arith.constant 0 : i32
    %c0_i32_0 = arith.constant 0 : i32
    return %arg0, %c0_i32 : i32, i32
  }
}

</mosaic_0001>

<llo_original>
// kernel: tpu_custom_call.1
$region0: #{tpu_custom_call.1}
  #allocation0 [shape = 'u32[]', space=smem, size = 0x4, offset = 0x4, fixed_abs, tag = 'smem constant byte address 0x4 - core index']
  #allocation1 [shape = 'u32[72,128]{1,0:T(1,128)}', space=vmem, size = 0x9000, scoped, tag = 'internal scratch']
  %s0 = inlined_call_operand.hbm [shape: f32[16,128], index: 0, kind: input, shape index: {}]
  %s1 = inlined_call_operand.hbm [shape: f32[128,128], index: 1, kind: input, shape index: {}]
  %s2 = inlined_call_operand.vmem [shape: f32[1,128], index: 2, kind: input, shape index: {}]
  %s3 = inlined_call_operand.hbm [shape: f32[128,128], index: 3, kind: input, shape index: {}]
  %s4 = inlined_call_operand.vmem [shape: f32[1,128], index: 4, kind: input, shape index: {}]
  %s5 = inlined_call_operand.hbm [shape: f32[16,128], index: 5, kind: output, shape index: {}]
  %s6 = sld [smem:[#allocation0]]
  $region42: #{tpu_custom_call.1} parent=0
    _
  %s8 = ssub.s32 1, %s6
  %s9 = scalar_select 0, %s8, %s6
  $region1: #{tpu_custom_call.1} parent=0
    #allocation2 [shape = 'u8[8192]{0}', space=vmem, size = 0x2000, scoped, tag = 'input window, operand 0, single buffered']
    #allocation3 [shape = 's32[1]{0}', space=sflag, size = 0x4, scoped, tag = 'scoped memory for tpu_custom_call.1']
    #allocation4 [shape = 's32[1]{0}', space=sflag, size = 0x4, scoped, tag = 'scoped memory for tpu_custom_call.1']
    #allocation5 [shape = 'u8[65536]{0}', space=vmem, size = 0x10000, scoped, tag = 'input window, operand 1, single buffered']
    #allocation6 [shape = 's32[1]{0}', space=sflag, size = 0x4, scoped, tag = 'scoped memory for tpu_custom_call.1']
    #allocation7 [shape = 'u8[65536]{0}', space=vmem, size = 0x10000, scoped, tag = 'input window, operand 3, single buffered']
    #allocation8 [shape = 'u8[8192]{0}', space=vmem, size = 0x2000, scoped, tag = 'output window, operand 0, single buffered']
    %10 = vsyncpa [#allocation3], 0
    %11 = vsyncpa [#allocation6], 0
    %12 = vsyncpa [#allocation4], 0
    // Predicated region
    $region2: #{tpu_custom_call.1} parent=1 // pred_check
      _
    $region3: #{tpu_custom_call.1} parent=1 // pred_check_branch
      %14 = sbr.rel (0) target = $region5
    $region4: #{tpu_custom_call.1} parent=1 // pred_region
      %16 = vsyncadd [#allocation3], 0
      %s17 = sshll.u32 %s0, 4
      %s18 = int_to_ptr.hbm [resolvable:$true] %s17
      %s19 = sshll.u32 [#allocation2], 4
      %s20 = int_to_ptr.vmem [resolvable:$true] %s19
      %25 = dma.hbm_to_vmem [thread:$0]  %s18, 256, %s20, [#allocation3], 128, 128, 8
    $region5: #{tpu_custom_call.1} parent=1 // pred_fallthru
      _
    // Predicated region
    $region6: #{tpu_custom_call.1} parent=1 // pred_check
      _
    $region7: #{tpu_custom_call.1} parent=1 // pred_check_branch
      %27 = sbr.rel (0) target = $region9
    $region8: #{tpu_custom_call.1} parent=1 // pred_region
      %29 = vsyncadd [#allocation6], 0
      %s30 = sshll.u32 %s1, 4
      %s31 = int_to_ptr.hbm [resolvable:$true] %s30
      %s32 = sshll.u32 [#allocation5], 4
      %s33 = int_to_ptr.vmem [resolvable:$true] %s32
      %38 = dma.hbm_to_vmem [thread:$0]  %s31, 2048, %s33, [#allocation6], 128, 128, 8
    $region9: #{tpu_custom_call.1} parent=1 // pred_fallthru
      _
    // Predicated region
    $region10: #{tpu_custom_call.1} parent=1 // pred_check
      _
    $region11: #{tpu_custom_call.1} parent=1 // pred_check_branch
      %40 = sbr.rel (0) target = $region13
    $region12: #{tpu_custom_call.1} parent=1 // pred_region
      _
    $region13: #{tpu_custom_call.1} parent=1 // pred_fallthru
      _
    // Predicated region
    $region14: #{tpu_custom_call.1} parent=1 // pred_check
      _
    $region15: #{tpu_custom_call.1} parent=1 // pred_check_branch
      %42 = sbr.rel (0) target = $region17
    $region16: #{tpu_custom_call.1} parent=1 // pred_region
      %44 = vsyncadd [#allocation6], 0
      %s45 = sshll.u32 %s3, 4
      %s46 = int_to_ptr.hbm [resolvable:$true] %s45
      %s47 = sshll.u32 [#allocation7], 4
      %s48 = int_to_ptr.vmem [resolvable:$true] %s47
      %53 = dma.hbm_to_vmem [thread:$0]  %s46, 2048, %s48, [#allocation6], 128, 128, 8
    $region17: #{tpu_custom_call.1} parent=1 // pred_fallthru
      _
    // Predicated region
    $region18: #{tpu_custom_call.1} parent=1 // pred_check
      _
    $region19: #{tpu_custom_call.1} parent=1 // pred_check_branch
      %55 = sbr.rel (0) target = $region21
    $region20: #{tpu_custom_call.1} parent=1 // pred_region
      _
    $region21: #{tpu_custom_call.1} parent=1 // pred_fallthru
      _
    // Predicated region
    $region22: #{tpu_custom_call.1} parent=1 // pred_check
      _
    $region23: #{tpu_custom_call.1} parent=1 // pred_check_branch
      %57 = sbr.rel (0) target = $region25
    $region24: #{tpu_custom_call.1} parent=1 // pred_region
      %59 = dma.done [#allocation3], 256
    $region25: #{tpu_custom_call.1} parent=1 // pred_fallthru
      _
    // Predicated region
    $region26: #{tpu_custom_call.1} parent=1 // pred_check
      _
    $region27: #{tpu_custom_call.1} parent=1 // pred_check_branch
      %61 = sbr.rel (0) target = $region29
    $region28: #{tpu_custom_call.1} parent=1 // pred_region
      %63 = dma.done [#allocation6], 2048
    $region29: #{tpu_custom_call.1} parent=1 // pred_fallthru
      _
    // Predicated region
    $region30: #{tpu_custom_call.1} parent=1 // pred_check
      _
    $region31: #{tpu_custom_call.1} parent=1 // pred_check_branch
      %65 = sbr.rel (0) target = $region33
    $region32: #{tpu_custom_call.1} parent=1 // pred_region
      %67 = dma.done [#allocation6], 2048
    $region33: #{tpu_custom_call.1} parent=1 // pred_fallthru
      _
    %v68 = vld [vmem:[#allocation2] sm:$0xff]
    %v69 = vld [vmem:[#allocation2 + $0x8] sm:$0xff]
    %70 = vadd.xlane.f32.xlu0 %v68
    %v71 = vpop.xlane.xlu0 %70
    %72 = vadd.xlane.f32.xlu0 %v69
    %v73 = vpop.xlane.xlu0 %72
    %v74 = vmul.f32 %v71, 0.03125
    %v75 = vmul.f32 %v73, 0.03125
    %v76 = vsub.f32 %v68, %v74
    %v77 = vsub.f32 %v69, %v75
    %v78 = vmul.f32 %v76, %v76
    %v79 = vmul.f32 %v77, %v77
    %80 = vadd.xlane.f32.xlu0 %v78
    %v81 = vpop.xlane.xlu0 %80
    %82 = vadd.xlane.f32.xlu0 %v79
    %v83 = vpop.xlane.xlu0 %82
    %v84 = vmul.f32 %v74, 96.0
    %v85 = vmul.f32 %v75, 96.0
    %v86 = vmul.f32 %v84, %v74
    %v87 = vmul.f32 %v85, %v75
    %v88 = vsub.f32 %v81, %v86
    %v89 = vsub.f32 %v83, %v87
    %v90 = vmul.f32 %v88, 0.03125
    %v91 = vmul.f32 %v89, 0.03125
    %v92 = vadd.f32 %v90, 1e-05
    %v93 = vadd.f32 %v91, 1e-05
    %v94 = vrsqrt.pop %v92
    %v95 = vmul.f32 %v94, %v92
    %v96 = vmul.f32 %v95, %v94
    %v97 = vmul.f32 0.5, %v96
    %v98 = vsub.f32 1.5, %v97
    %v99 = vmul.f32 %v94, %v98
    %vm100 = vweird.f32 %v92
    %vm101 = vweird.f32 %v94
    %vm102 = vmor %vm100, %vm101
    %v103 = vsel %vm102, %v94, %v99
    %v104 = vrsqrt.pop %v93
    %v105 = vmul.f32 %v104, %v93
    %v106 = vmul.f32 %v105, %v104
    %v107 = vmul.f32 0.5, %v106
    %v108 = vsub.f32 1.5, %v107
    %v109 = vmul.f32 %v104, %v108
    %vm110 = vweird.f32 %v93
    %vm111 = vweird.f32 %v104
    %vm112 = vmor %vm110, %vm111
    %v113 = vsel %vm112, %v104, %v109
    %v114 = vmul.f32 %v76, %v103
    %v115 = vmul.f32 %v77, %v113
    %v116 = vld [vmem:[#allocation5] sm:$0xff]
    %v117 = vld [vmem:[#allocation5 + $0x8] sm:$0xff]
    %v118 = vld [vmem:[#allocation5 + $0x10] sm:$0xff]
    %v119 = vld [vmem:[#allocation5 + $0x18] sm:$0xff]
    %v120 = vld [vmem:[#allocation5 + $0x20] sm:$0xff]
    %v121 = vld [vmem:[#allocation5 + $0x28] sm:$0xff]
    %v122 = vld [vmem:[#allocation5 + $0x30] sm:$0xff]
    %v123 = vld [vmem:[#allocation5 + $0x38] sm:$0xff]
    %v124 = vld [vmem:[#allocation5 + $0x40] sm:$0xff]
    %v125 = vld [vmem:[#allocation5 + $0x48] sm:$0xff]
    %v126 = vld [vmem:[#allocation5 + $0x50] sm:$0xff]
    %v127 = vld [vmem:[#allocation5 + $0x58] sm:$0xff]
    %v128 = vld [vmem:[#allocation5 + $0x60] sm:$0xff]
    %v129 = vld [vmem:[#allocation5 + $0x68] sm:$0xff]
    %v130 = vld [vmem:[#allocation5 + $0x70] sm:$0xff]
    %v131 = vld [vmem:[#allocation5 + $0x78] sm:$0xff]
    %v132 = vld [vmem:[%s2] sm:$0x1]
    %v134 = vperm.slane %v132, 0
    %136 = vmatpush.msra.mxu0 %v131
    %137 = vmatpush.msra.mxu0 %v130
    %138 = vmatpush.msra.mxu0 %v129
    %139 = vmatpush.msra.mxu0 %v128
    %140 = vmatpush.msra.mxu0 %v127
    %141 = vmatpush.msra.mxu0 %v126
    %142 = vmatpush.msra.mxu0 %v125
    %143 = vmatpush.msra.mxu0 %v124
    %144 = vmatpush.msra.mxu0 %v123
    %145 = vmatpush.msra.mxu0 %v122
    %146 = vmatpush.msra.mxu0 %v121
    %147 = vmatpush.msra.mxu0 %v120
    %148 = vmatpush.msra.mxu0 %v119
    %149 = vmatpush.msra.mxu0 %v118
    %150 = vmatpush.msra.mxu0 %v117
    %151 = vmatpush.msra.mxu0 %v116
    %152 = vmatmul.f32.gmra.mxu0 %v114
    %v153 = vpop.f32.mrf.mxu0
    %v154 = vadd.f32 %v134, %v153
    %155 = vmatmul.f32.gmra.mxu0 %v115
    %v156 = vpop.f32.mrf.mxu0
    %v157 = vadd.f32 %v134, %v156
    %158 = vdwg.mxu0
    %v159 = vmul.f32 %v154, 0.5
    %v160 = vmul.f32 %v157, 0.5
    %v161 = vmul.f32 %v154, 0.70710677
    %v162 = vmul.f32 %v157, 0.70710677
    %v163 = vmul.f32 %v161, %v161
    %v164 = vmin.f32 16.0, %v163
    %v165 = vmul.f32 %v164, 2.1237322e-06
    %v166 = vadd.f32 %v165, 0.00028619796
    %v167 = vmul.f32 %v164, %v166
    %v168 = vadd.f32 %v167, 0.0036580483
    %v169 = vmul.f32 %v164, %v168
    %v170 = vadd.f32 %v169, 0.05243302
    %v171 = vmul.f32 %v164, %v170
    %v172 = vadd.f32 %v171, 0.18741608
    %v173 = vmul.f32 %v164, %v172
    %v174 = vadd.f32 %v173, 1.1283791
    %v175 = vmul.f32 %v161, %v174
    %v176 = vmul.f32 %v164, 3.8918573e-05
    %v177 = vadd.f32 %v176, 0.001143296
    %v178 = vmul.f32 %v164, %v177
    %v179 = vadd.f32 %v178, 0.014752088
    %v180 = vmul.f32 %v164, %v179
    %v181 = vadd.f32 %v180, 0.112945676
    %v182 = vmul.f32 %v164, %v181
    %v183 = vadd.f32 %v182, 0.4994258
    %v184 = vmul.f32 %v164, %v183
    %v185 = vadd.f32 %v184, 1.0
    %v186 = vrcp.pop %v185
    %v187 = vmul.f32 %v185, %v186
    %v188 = vsub.f32 1.0, %v187
    %v189 = vmul.f32 %v186, %v188
    %v190 = vadd.f32 %v186, %v189
    %vm191 = vweird.f32 %v185
    %vm192 = vweird.f32 %v186
    %vm193 = vmor %vm191, %vm192
    %v194 = vsel %vm193, %v186, %v190
    %v195 = vand.u32 2147483647, %v185
    %vm196 = vcmp.eq.f32.partialorder %v195, 8.507059e+37
    %v197 = vand.u32 %v185, 2147483648
    %v198 = vor.u32 1.1754944e-38, %v197
    %v199 = vsel %vm196, %v198, %v194
    %v200 = vmul.f32 %v175, %v199
    %v201 = vmin.f32 %v200, 1.0
    %v202 = vmax.f32 %v201, -1.0
    %v203 = vmul.f32 %v162, %v162
    %v204 = vmin.f32 16.0, %v203
    %v205 = vmul.f32 %v204, 2.1237322e-06
    %v206 = vadd.f32 %v205, 0.00028619796
    %v207 = vmul.f32 %v204, %v206
    %v208 = vadd.f32 %v207, 0.0036580483
    %v209 = vmul.f32 %v204, %v208
    %v210 = vadd.f32 %v209, 0.05243302
    %v211 = vmul.f32 %v204, %v210
    %v212 = vadd.f32 %v211, 0.18741608
    %v213 = vmul.f32 %v204, %v212
    %v214 = vadd.f32 %v213, 1.1283791
    %v215 = vmul.f32 %v162, %v214
    %v216 = vmul.f32 %v204, 3.8918573e-05
    %v217 = vadd.f32 %v216, 0.001143296
    %v218 = vmul.f32 %v204, %v217
    %v219 = vadd.f32 %v218, 0.014752088
    %v220 = vmul.f32 %v204, %v219
    %v221 = vadd.f32 %v220, 0.112945676
    %v222 = vmul.f32 %v204, %v221
    %v223 = vadd.f32 %v222, 0.4994258
    %v224 = vmul.f32 %v204, %v223
    %v225 = vadd.f32 %v224, 1.0
    %v226 = vrcp.pop %v225
    %v227 = vmul.f32 %v225, %v226
    %v228 = vsub.f32 1.0, %v227
    %v229 = vmul.f32 %v226, %v228
    %v230 = vadd.f32 %v226, %v229
    %vm231 = vweird.f32 %v225
    %vm232 = vweird.f32 %v226
    %vm233 = vmor %vm231, %vm232
    %v234 = vsel %vm233, %v226, %v230
    %v235 = vand.u32 2147483647, %v225
    %vm236 = vcmp.eq.f32.partialorder %v235, 8.507059e+37
    %v237 = vand.u32 %v225, 2147483648
    %v238 = vor.u32 1.1754944e-38, %v237
    %v239 = vsel %vm236, %v238, %v234
    %v240 = vmul.f32 %v215, %v239
    %v241 = vmin.f32 %v240, 1.0
    %v242 = vmax.f32 %v241, -1.0
    %v243 = vadd.f32 %v202, 1.0
    %v244 = vadd.f32 %v242, 1.0
    %v245 = vmul.f32 %v159, %v243
    %v246 = vmul.f32 %v160, %v244
    %v247 = vld [vmem:[#allocation7] sm:$0xff]
    %v248 = vld [vmem:[#allocation7 + $0x8] sm:$0xff]
    %v249 = vld [vmem:[#allocation7 + $0x10] sm:$0xff]
    %v250 = vld [vmem:[#allocation7 + $0x18] sm:$0xff]
    %v251 = vld [vmem:[#allocation7 + $0x20] sm:$0xff]
    %v252 = vld [vmem:[#allocation7 + $0x28] sm:$0xff]
    %v253 = vld [vmem:[#allocation7 + $0x30] sm:$0xff]
    %v254 = vld [vmem:[#allocation7 + $0x38] sm:$0xff]
    %v255 = vld [vmem:[#allocation7 + $0x40] sm:$0xff]
    %v256 = vld [vmem:[#allocation7 + $0x48] sm:$0xff]
    %v257 = vld [vmem:[#allocation7 + $0x50] sm:$0xff]
    %v258 = vld [vmem:[#allocation7 + $0x58] sm:$0xff]
    %v259 = vld [vmem:[#allocation7 + $0x60] sm:$0xff]
    %v260 = vld [vmem:[#allocation7 + $0x68] sm:$0xff]
    %v261 = vld [vmem:[#allocation7 + $0x70] sm:$0xff]
    %v262 = vld [vmem:[#allocation7 + $0x78] sm:$0xff]
    %v263 = vld [vmem:[%s4] sm:$0x1]
    %v265 = vperm.slane %v263, 0
    %267 = vmatpush.msra.mxu0 %v262
    %268 = vmatpush.msra.mxu0 %v261
    %269 = vmatpush.msra.mxu0 %v260
    %270 = vmatpush.msra.mxu0 %v259
    %271 = vmatpush.msra.mxu0 %v258
    %272 = vmatpush.msra.mxu0 %v257
    %273 = vmatpush.msra.mxu0 %v256
    %274 = vmatpush.msra.mxu0 %v255
    %275 = vmatpush.msra.mxu0 %v254
    %276 = vmatpush.msra.mxu0 %v253
    %277 = vmatpush.msra.mxu0 %v252
    %278 = vmatpush.msra.mxu0 %v251
    %279 = vmatpush.msra.mxu0 %v250
    %280 = vmatpush.msra.mxu0 %v249
    %281 = vmatpush.msra.mxu0 %v248
    %282 = vmatpush.msra.mxu0 %v247
    %283 = vmatmul.f32.gmra.mxu0 %v245
    %v284 = vpop.f32.mrf.mxu0
    %v285 = vadd.f32 %v265, %v284
    %286 = vmatmul.f32.gmra.mxu0 %v246
    %v287 = vpop.f32.mrf.mxu0
    %v288 = vadd.f32 %v265, %v287
    %289 = vdwg.mxu0
    %v290 = vadd.f32 %v285, %v68
    %v291 = vadd.f32 %v288, %v69
    %292 = vst [vmem:[#allocation8] sm:$0xff] %v290
    %293 = vst [vmem:[#allocation8 + $0x8] sm:$0xff] %v291
    // Predicated region
    $region34: #{tpu_custom_call.1} parent=1 // pred_check
      _
    $region35: #{tpu_custom_call.1} parent=1 // pred_check_branch
      %295 = sbr.rel (0) target = $region37
    $region36: #{tpu_custom_call.1} parent=1 // pred_region
      %297 = vsyncadd [#allocation4], 0
      %s298 = sshll.u32 [#allocation8], 4
      %s299 = int_to_ptr.vmem [resolvable:$true] %s298
      %s300 = sshll.u32 %s5, 4
      %s301 = int_to_ptr.hbm [resolvable:$true] %s300
      %306 = dma.vmem_to_hbm [thread:$0]  %s299, 256, %s301, [#allocation4], 128, 128, 8
    $region37: #{tpu_custom_call.1} parent=1 // pred_fallthru
      _
    // Predicated region
    $region38: #{tpu_custom_call.1} parent=1 // pred_check
      _
    $region39: #{tpu_custom_call.1} parent=1 // pred_check_branch
      %308 = sbr.rel (0) target = $region41
    $region40: #{tpu_custom_call.1} parent=1 // pred_region
      %310 = dma.done [#allocation4], 256
    $region41: #{tpu_custom_call.1} parent=1 // pred_fallthru
      _
    %311 = vsyncpa [#allocation3], 1
    %312 = vsyncpa [#allocation6], 1
    %313 = vsyncpa [#allocation4], 1

// kernel: tpu_custom_call.1
$region0: #{tpu_custom_call.1}
  #allocation0 [shape = 'u32[]', space=smem, size = 0x4, offset = 0x4, fixed_abs, tag = 'smem constant byte address 0x4 - core index']
  #allocation1 [shape = 'u32[72,128]{1,0:T(1,128)}', space=vmem, size = 0x9000, scoped, tag = 'internal scratch']
  %s0 = inlined_call_operand.hbm [shape: f32[16,128], index: 0, kind: input, shape index: {}]
  %s1 = inlined_call_operand.hbm [shape: f32[128,128], index: 1, kind: input, shape index: {}]
  %s2 = inlined_call_operand.vmem [shape: f32[1,128], index: 2, kind: input, shape index: {}]
  %s3 = inlined_call_operand.hbm [shape: f32[128,128], index: 3, kind: input, shape index: {}]
  %s4 = inlined_call_operand.vmem [shape: f32[1,128], index: 4, kind: input, shape index: {}]
  %s5 = inlined_call_operand.hbm [shape: f32[16,128], index: 5, kind: output, shape index: {}]
  %s6 = sld [smem:[#allocation0]]
  $region42: #{tpu_custom_call.1} parent=0
    _
  %s8 = ssub.s32 1, %s6
  %s9 = scalar_select 0, %s8, %s6
  $region1: #{tpu_custom_call.1} parent=0
    #allocation2 [shape = 'u8[8192]{0}', space=vmem, size = 0x2000, scoped, tag = 'input window, operand 0, single buffered']
    #allocation3 [shape = 's32[1]{0}', space=sflag, size = 0x4, scoped, tag = 'scoped memory for tpu_custom_call.1']
    #allocation4 [shape = 's32[1]{0}', space=sflag, size = 0x4, scoped, tag = 'scoped memory for tpu_custom_call.1']
    #allocation5 [shape = 'u8[65536]{0}', space=vmem, size = 0x10000, scoped, tag = 'input window, operand 1, single buffered']
    #allocation6 [shape = 's32[1]{0}', space=sflag, size = 0x4, scoped, tag = 'scoped memory for tpu_custom_call.1']
    #allocation7 [shape = 'u8[65536]{0}', space=vmem, size = 0x10000, scoped, tag = 'input window, operand 3, single buffered']
    #allocation8 [shape = 'u8[8192]{0}', space=vmem, size = 0x2000, scoped, tag = 'output window, operand 0, single buffered']
    %10 = vsyncpa [#allocation3], 0
    %11 = vsyncpa [#allocation6], 0
    %12 = vsyncpa [#allocation4], 0
    // Predicated region
    $region2: #{tpu_custom_call.1} parent=1 // pred_check
      _
    $region3: #{tpu_custom_call.1} parent=1 // pred_check_branch
      %14 = sbr.rel (0) target = $region5
    $region4: #{tpu_custom_call.1} parent=1 // pred_region
      %16 = vsyncadd [#allocation3], 0
      %s17 = sshll.u32 %s0, 4
      %s18 = int_to_ptr.hbm [resolvable:$true] %s17
      %s19 = sshll.u32 [#allocation2], 4
      %s20 = int_to_ptr.vmem [resolvable:$true] %s19
      %25 = dma.hbm_to_vmem [thread:$0]  %s18, 256, %s20, [#allocation3], 128, 128, 8
    $region5: #{tpu_custom_call.1} parent=1 // pred_fallthru
      _
    // Predicated region
    $region6: #{tpu_custom_call.1} parent=1 // pred_check
      _
    $region7: #{tpu_custom_call.1} parent=1 // pred_check_branch
      %27 = sbr.rel (0) target = $region9
    $region8: #{tpu_custom_call.1} parent=1 // pred_region
      %29 = vsyncadd [#allocation6], 0
      %s30 = sshll.u32 %s1, 4
      %s31 = int_to_ptr.hbm [resolvable:$true] %s30
      %s32 = sshll.u32 [#allocation5], 4
      %s33 = int_to_ptr.vmem [resolvable:$true] %s32
      %38 = dma.hbm_to_vmem [thread:$0]  %s31, 2048, %s33, [#allocation6], 128, 128, 8
    $region9: #{tpu_custom_call.1} parent=1 // pred_fallthru
      _
    // Predicated region
    $region10: #{tpu_custom_call.1} parent=1 // pred_check
      _
    $region11: #{tpu_custom_call.1} parent=1 // pred_check_branch
      %40 = sbr.rel (0) target = $region13
    $region12: #{tpu_custom_call.1} parent=1 // pred_region
      _
    $region13: #{tpu_custom_call.1} parent=1 // pred_fallthru
      _
    // Predicated region
    $region14: #{tpu_custom_call.1} parent=1 // pred_check
      _
    $region15: #{tpu_custom_call.1} parent=1 // pred_check_branch
      %42 = sbr.rel (0) target = $region17
    $region16: #{tpu_custom_call.1} parent=1 // pred_region
      %44 = vsyncadd [#allocation6], 0
      %s45 = sshll.u32 %s3, 4
      %s46 = int_to_ptr.hbm [resolvable:$true] %s45
      %s47 = sshll.u32 [#allocation7], 4
      %s48 = int_to_ptr.vmem [resolvable:$true] %s47
      %53 = dma.hbm_to_vmem [thread:$0]  %s46, 2048, %s48, [#allocation6], 128, 128, 8
    $region17: #{tpu_custom_call.1} parent=1 // pred_fallthru
      _
    // Predicated region
    $region18: #{tpu_custom_call.1} parent=1 // pred_check
      _
    $region19: #{tpu_custom_call.1} parent=1 // pred_check_branch
      %55 = sbr.rel (0) target = $region21
    $region20: #{tpu_custom_call.1} parent=1 // pred_region
      _
    $region21: #{tpu_custom_call.1} parent=1 // pred_fallthru
      _
    // Predicated region
    $region22: #{tpu_custom_call.1} parent=1 // pred_check
      _
    $region23: #{tpu_custom_call.1} parent=1 // pred_check_branch
      %57 = sbr.rel (0) target = $region25
    $region24: #{tpu_custom_call.1} parent=1 // pred_region
      %59 = dma.done [#allocation3], 256
    $region25: #{tpu_custom_call.1} parent=1 // pred_fallthru
      _
    // Predicated region
    $region26: #{tpu_custom_call.1} parent=1 // pred_check
      _
    $region27: #{tpu_custom_call.1} parent=1 // pred_check_branch
      %61 = sbr.rel (0) target = $region29
    $region28: #{tpu_custom_call.1} parent=1 // pred_region
      %63 = dma.done [#allocation6], 2048
    $region29: #{tpu_custom_call.1} parent=1 // pred_fallthru
      _
    // Predicated region
    $region30: #{tpu_custom_call.1} parent=1 // pred_check
      _
    $region31: #{tpu_custom_call.1} parent=1 // pred_check_branch
      %65 = sbr.rel (0) target = $region33
    $region32: #{tpu_custom_call.1} parent=1 // pred_region
      %67 = dma.done [#allocation6], 2048
    $region33: #{tpu_custom_call.1} parent=1 // pred_fallthru
      _
    %v68 = vld [vmem:[#allocation2] sm:$0xff]
    %v69 = vld [vmem:[#allocation2 + $0x8] sm:$0xff]
    %70 = vadd.xlane.f32.xlu0 %v68
    %v71 = vpop.xlane.xlu0 %70
    %72 = vadd.xlane.f32.xlu0 %v69
    %v73 = vpop.xlane.xlu0 %72
    %v74 = vmul.f32 %v71, 0.03125
    %v75 = vmul.f32 %v73, 0.03125
    %v76 = vsub.f32 %v68, %v74
    %v77 = vsub.f32 %v69, %v75
    %v78 = vmul.f32 %v76, %v76
    %v79 = vmul.f32 %v77, %v77
    %80 = vadd.xlane.f32.xlu0 %v78
    %v81 = vpop.xlane.xlu0 %80
    %82 = vadd.xlane.f32.xlu0 %v79
    %v83 = vpop.xlane.xlu0 %82
    %v84 = vmul.f32 %v74, 96.0
    %v85 = vmul.f32 %v75, 96.0
    %v86 = vmul.f32 %v84, %v74
    %v87 = vmul.f32 %v85, %v75
    %v88 = vsub.f32 %v81, %v86
    %v89 = vsub.f32 %v83, %v87
    %v90 = vmul.f32 %v88, 0.03125
    %v91 = vmul.f32 %v89, 0.03125
    %v92 = vadd.f32 %v90, 1e-05
    %v93 = vadd.f32 %v91, 1e-05
    %v94 = vrsqrt.pop %v92
    %v95 = vmul.f32 %v94, %v92
    %v96 = vmul.f32 %v95, %v94
    %v97 = vmul.f32 0.5, %v96
    %v98 = vsub.f32 1.5, %v97
    %v99 = vmul.f32 %v94, %v98
    %vm100 = vweird.f32 %v92
    %vm101 = vweird.f32 %v94
    %vm102 = vmor %vm100, %vm101
    %v103 = vsel %vm102, %v94, %v99
    %v104 = vrsqrt.pop %v93
    %v105 = vmul.f32 %v104, %v93
    %v106 = vmul.f32 %v105, %v104
    %v107 = vmul.f32 0.5, %v106
    %v108 = vsub.f32 1.5, %v107
    %v109 = vmul.f32 %v104, %v108
    %vm110 = vweird.f32 %v93
    %vm111 = vweird.f32 %v104
    %vm112 = vmor %vm110, %vm111
    %v113 = vsel %vm112, %v104, %v109
    %v114 = vmul.f32 %v76, %v103
    %v115 = vmul.f32 %v77, %v113
    %v116 = vld [vmem:[#allocation5] sm:$0xff]
    %v117 = vld [vmem:[#allocation5 + $0x8] sm:$0xff]
    %v118 = vld [vmem:[#allocation5 + $0x10] sm:$0xff]
    %v119 = vld [vmem:[#allocation5 + $0x18] sm:$0xff]
    %v120 = vld [vmem:[#allocation5 + $0x20] sm:$0xff]
    %v121 = vld [vmem:[#allocation5 + $0x28] sm:$0xff]
    %v122 = vld [vmem:[#allocation5 + $0x30] sm:$0xff]
    %v123 = vld [vmem:[#allocation5 + $0x38] sm:$0xff]
    %v124 = vld [vmem:[#allocation5 + $0x40] sm:$0xff]
    %v125 = vld [vmem:[#allocation5 + $0x48] sm:$0xff]
    %v126 = vld [vmem:[#allocation5 + $0x50] sm:$0xff]
    %v127 = vld [vmem:[#allocation5 + $0x58] sm:$0xff]
    %v128 = vld [vmem:[#allocation5 + $0x60] sm:$0xff]
    %v129 = vld [vmem:[#allocation5 + $0x68] sm:$0xff]
    %v130 = vld [vmem:[#allocation5 + $0x70] sm:$0xff]
    %v131 = vld [vmem:[#allocation5 + $0x78] sm:$0xff]
    %v132 = vld [vmem:[%s2] sm:$0x1]
    %v134 = vperm.slane %v132, 0
    %136 = vmatpush.msra.mxu0 %v131
    %137 = vmatpush.msra.mxu0 %v130
    %138 = vmatpush.msra.mxu0 %v129
    %139 = vmatpush.msra.mxu0 %v128
    %140 = vmatpush.msra.mxu0 %v127
    %141 = vmatpush.msra.mxu0 %v126
    %142 = vmatpush.msra.mxu0 %v125
    %143 = vmatpush.msra.mxu0 %v124
    %144 = vmatpush.msra.mxu0 %v123
    %145 = vmatpush.msra.mxu0 %v122
    %146 = vmatpush.msra.mxu0 %v121
    %147 = vmatpush.msra.mxu0 %v120
    %148 = vmatpush.msra.mxu0 %v119
    %149 = vmatpush.msra.mxu0 %v118
    %150 = vmatpush.msra.mxu0 %v117
    %151 = vmatpush.msra.mxu0 %v116
    %152 = vmatmul.f32.gmra.mxu0 %v114
    %v153 = vpop.f32.mrf.mxu0
    %v154 = vadd.f32 %v134, %v153
    %155 = vmatmul.f32.gmra.mxu0 %v115
    %v156 = vpop.f32.mrf.mxu0
    %v157 = vadd.f32 %v134, %v156
    %158 = vdwg.mxu0
    %v159 = vmul.f32 %v154, 0.5
    %v160 = vmul.f32 %v157, 0.5
    %v161 = vmul.f32 %v154, 0.70710677
    %v162 = vmul.f32 %v157, 0.70710677
    %v163 = vmul.f32 %v161, %v161
    %v164 = vmin.f32 16.0, %v163
    %v165 = vmul.f32 %v164, 2.1237322e-06
    %v166 = vadd.f32 %v165, 0.00028619796
    %v167 = vmul.f32 %v164, %v166
    %v168 = vadd.f32 %v167, 0.0036580483
    %v169 = vmul.f32 %v164, %v168
    %v170 = vadd.f32 %v169, 0.05243302
    %v171 = vmul.f32 %v164, %v170
    %v172 = vadd.f32 %v171, 0.18741608
    %v173 = vmul.f32 %v164, %v172
    %v174 = vadd.f32 %v173, 1.1283791
    %v175 = vmul.f32 %v161, %v174
    %v176 = vmul.f32 %v164, 3.8918573e-05
    %v177 = vadd.f32 %v176, 0.001143296
    %v178 = vmul.f32 %v164, %v177
    %v179 = vadd.f32 %v178, 0.014752088
    %v180 = vmul.f32 %v164, %v179
    %v181 = vadd.f32 %v180, 0.112945676
    %v182 = vmul.f32 %v164, %v181
    %v183 = vadd.f32 %v182, 0.4994258
    %v184 = vmul.f32 %v164, %v183
    %v185 = vadd.f32 %v184, 1.0
    %v186 = vrcp.pop %v185
    %v187 = vmul.f32 %v185, %v186
    %v188 = vsub.f32 1.0, %v187
    %v189 = vmul.f32 %v186, %v188
    %v190 = vadd.f32 %v186, %v189
    %vm191 = vweird.f32 %v185
    %vm192 = vweird.f32 %v186
    %vm193 = vmor %vm191, %vm192
    %v194 = vsel %vm193, %v186, %v190
    %v195 = vand.u32 2147483647, %v185
    %vm196 = vcmp.eq.f32.partialorder %v195, 8.507059e+37
    %v197 = vand.u32 %v185, 2147483648
    %v198 = vor.u32 1.1754944e-38, %v197
    %v199 = vsel %vm196, %v198, %v194
    %v200 = vmul.f32 %v175, %v199
    %v201 = vmin.f32 %v200, 1.0
    %v202 = vmax.f32 %v201, -1.0
    %v203 = vmul.f32 %v162, %v162
    %v204 = vmin.f32 16.0, %v203
    %v205 = vmul.f32 %v204, 2.1237322e-06
    %v206 = vadd.f32 %v205, 0.00028619796
    %v207 = vmul.f32 %v204, %v206
    %v208 = vadd.f32 %v207, 0.0036580483
    %v209 = vmul.f32 %v204, %v208
    %v210 = vadd.f32 %v209, 0.05243302
    %v211 = vmul.f32 %v204, %v210
    %v212 = vadd.f32 %v211, 0.18741608
    %v213 = vmul.f32 %v204, %v212
    %v214 = vadd.f32 %v213, 1.1283791
    %v215 = vmul.f32 %v162, %v214
    %v216 = vmul.f32 %v204, 3.8918573e-05
    %v217 = vadd.f32 %v216, 0.001143296
    %v218 = vmul.f32 %v204, %v217
    %v219 = vadd.f32 %v218, 0.014752088
    %v220 = vmul.f32 %v204, %v219
    %v221 = vadd.f32 %v220, 0.112945676
    %v222 = vmul.f32 %v204, %v221
    %v223 = vadd.f32 %v222, 0.4994258
    %v224 = vmul.f32 %v204, %v223
    %v225 = vadd.f32 %v224, 1.0
    %v226 = vrcp.pop %v225
    %v227 = vmul.f32 %v225, %v226
    %v228 = vsub.f32 1.0, %v227
    %v229 = vmul.f32 %v226, %v228
    %v230 = vadd.f32 %v226, %v229
    %vm231 = vweird.f32 %v225
    %vm232 = vweird.f32 %v226
    %vm233 = vmor %vm231, %vm232
    %v234 = vsel %vm233, %v226, %v230
    %v235 = vand.u32 2147483647, %v225
    %vm236 = vcmp.eq.f32.partialorder %v235, 8.507059e+37
    %v237 = vand.u32 %v225, 2147483648
    %v238 = vor.u32 1.1754944e-38, %v237
    %v239 = vsel %vm236, %v238, %v234
    %v240 = vmul.f32 %v215, %v239
    %v241 = vmin.f32 %v240, 1.0
    %v242 = vmax.f32 %v241, -1.0
    %v243 = vadd.f32 %v202, 1.0
    %v244 = vadd.f32 %v242, 1.0
    %v245 = vmul.f32 %v159, %v243
    %v246 = vmul.f32 %v160, %v244
    %v247 = vld [vmem:[#allocation7] sm:$0xff]
    %v248 = vld [vmem:[#allocation7 + $0x8] sm:$0xff]
    %v249 = vld [vmem:[#allocation7 + $0x10] sm:$0xff]
    %v250 = vld [vmem:[#allocation7 + $0x18] sm:$0xff]
    %v251 = vld [vmem:[#allocation7 + $0x20] sm:$0xff]
    %v252 = vld [vmem:[#allocation7 + $0x28] sm:$0xff]
    %v253 = vld [vmem:[#allocation7 + $0x30] sm:$0xff]
    %v254 = vld [vmem:[#allocation7 + $0x38] sm:$0xff]
    %v255 = vld [vmem:[#allocation7 + $0x40] sm:$0xff]
    %v256 = vld [vmem:[#allocation7 + $0x48] sm:$0xff]
    %v257 = vld [vmem:[#allocation7 + $0x50] sm:$0xff]
    %v258 = vld [vmem:[#allocation7 + $0x58] sm:$0xff]
    %v259 = vld [vmem:[#allocation7 + $0x60] sm:$0xff]
    %v260 = vld [vmem:[#allocation7 + $0x68] sm:$0xff]
    %v261 = vld [vmem:[#allocation7 + $0x70] sm:$0xff]
    %v262 = vld [vmem:[#allocation7 + $0x78] sm:$0xff]
    %v263 = vld [vmem:[%s4] sm:$0x1]
    %v265 = vperm.slane %v263, 0
    %267 = vmatpush.msra.mxu0 %v262
    %268 = vmatpush.msra.mxu0 %v261
    %269 = vmatpush.msra.mxu0 %v260
    %270 = vmatpush.msra.mxu0 %v259
    %271 = vmatpush.msra.mxu0 %v258
    %272 = vmatpush.msra.mxu0 %v257
    %273 = vmatpush.msra.mxu0 %v256
    %274 = vmatpush.msra.mxu0 %v255
    %275 = vmatpush.msra.mxu0 %v254
    %276 = vmatpush.msra.mxu0 %v253
    %277 = vmatpush.msra.mxu0 %v252
    %278 = vmatpush.msra.mxu0 %v251
    %279 = vmatpush.msra.mxu0 %v250
    %280 = vmatpush.msra.mxu0 %v249
    %281 = vmatpush.msra.mxu0 %v248
    %282 = vmatpush.msra.mxu0 %v247
    %283 = vmatmul.f32.gmra.mxu0 %v245
    %v284 = vpop.f32.mrf.mxu0
    %v285 = vadd.f32 %v265, %v284
    %286 = vmatmul.f32.gmra.mxu0 %v246
    %v287 = vpop.f32.mrf.mxu0
    %v288 = vadd.f32 %v265, %v287
    %289 = vdwg.mxu0
    %v290 = vadd.f32 %v285, %v68
    %v291 = vadd.f32 %v288, %v69
    %292 = vst [vmem:[#allocation8] sm:$0xff] %v290
    %293 = vst [vmem:[#allocation8 + $0x8] sm:$0xff] %v291
    // Predicated region
    $region34: #{tpu_custom_call.1} parent=1 // pred_check
      _
    $region35: #{tpu_custom_call.1} parent=1 // pred_check_branch
      %295 = sbr.rel (0) target = $region37
    $region36: #{tpu_custom_call.1} parent=1 // pred_region
      %297 = vsyncadd [#allocation4], 0
      %s298 = sshll.u32 [#allocation8], 4
      %s299 = int_to_ptr.vmem [resolvable:$true] %s298
      %s300 = sshll.u32 %s5, 4
      %s301 = int_to_ptr.hbm [resolvable:$true] %s300
      %306 = dma.vmem_to_hbm [thread:$0]  %s299, 256, %s301, [#allocation4], 128, 128, 8
    $region37: #{tpu_custom_call.1} parent=1 // pred_fallthru
      _
    // Predicated region
    $region38: #{tpu_custom_call.1} parent=1 // pred_check
      _
    $region39: #{tpu_custom_call.1} parent=1 // pred_check_branch
      %308 = sbr.rel (0) target = $region41
    $region40: #{tpu_custom_call.1} parent=1 // pred_region
      %310 = dma.done [#allocation4], 256
    $region41: #{tpu_custom_call.1} parent=1 // pred_fallthru
      _
    %311 = vsyncpa [#allocation3], 1
    %312 = vsyncpa [#allocation6], 1
    %313 = vsyncpa [#allocation4], 1

</llo_original>
